<compile_context>
chip_gen: v5e
topology: v5e:2x2
jax: 0.10.0
libtpu: 0.0.40
codegen_flags: <defaults>
</compile_context>

<pallas_src>
import functools
import math

import numpy as np
import jax
import jax.numpy as jnp
from jax import lax
from jax.experimental import pallas as pl
from jax.experimental.pallas import tpu as pltpu


def _round_up(x, m):
    return ((x + m - 1) // m) * m


# ----------------------------------------------------------------------------
# Window construction (deterministic "parameter" init, mirrors diffsptk.Window)
# ----------------------------------------------------------------------------
def _make_window_np(length, window="rectangular", norm="none"):
    if window == "rectangular":
        w = np.ones(length, dtype=np.float64)
    elif window == "hanning":
        w = np.hanning(length)
    elif window == "hamming":
        w = np.hamming(length)
    elif window == "bartlett":
        w = np.bartlett(length)
    elif window == "blackman":
        w = np.blackman(length)
    else:
        # TODO(synk): 'trapezoidal' window not implemented; module default is 'rectangular'.
        raise ValueError(f"unsupported window: {window}")

    if norm == "none":
        pass
    elif norm == "power":
        w = w / np.sqrt(np.sum(w ** 2))
    elif norm == "magnitude":
        w = w / np.sum(w)
    else:
        raise ValueError(f"unsupported norm: {norm}")
    return w


# ----------------------------------------------------------------------------
# Cached host-side plan: window in chunk layout + reciprocal denominator
# ----------------------------------------------------------------------------
@functools.lru_cache(maxsize=64)
def _unframe_plan(N, L, P, out_len, start, window, norm):
    K = -(-L // P)                      # ceil(L / P): overlap factor
    Lp = K * P
    NP = N * P
    T_full = (N - 1) * P + L

    pad_left = (-start) % 128           # lane-align the output read offset
    read_off = start + pad_left         # multiple of 128
    T_out_pad = _round_up(max(out_len, 1), 128)            # lane-dense output
    T_acc = _round_up(max(pad_left + (N + K - 1) * P, read_off + T_out_pad), 128)

    windowed = not (window == "rectangular" and norm == "none")

    w = _make_window_np(L, window=window, norm=norm)        # (L,)
    w_pad = np.zeros(Lp, dtype=np.float64)
    w_pad[:L] = w

    wk = None
    if windowed:
        # Window in the same chunk-major (K, 1, N*P) layout as the kernel input.
        wk_np = np.tile(w_pad.reshape(K, P), (1, N)).reshape(K, 1, NP)
        wk = jnp.asarray(wk_np, dtype=jnp.float32)

    # Denominator fold(window), batch independent -> precompute reciprocal.
    den = np.zeros(T_full, dtype=np.float64)
    for n in range(N):
        den[n * P:n * P + L] += w
    inv_np = np.zeros(T_out_pad, dtype=np.float64)
    with np.errstate(divide="ignore"):
        # NOTE: den can be exactly 0 at valid samples for zero-endpoint windows
        # with large P; like the reference (F.fold division) this yields inf/nan.
        inv_np[:out_len] = 1.0 / den[start:start + out_len]
    inv = jnp.asarray(inv_np.reshape(1, T_out_pad), dtype=jnp.float32)

    return wk, inv, K, Lp, NP, pad_left, read_off, T_out_pad, T_acc, windowed


# ----------------------------------------------------------------------------
# Pallas kernel: K shifted VPU adds (overlap-add) + reciprocal multiply
# ----------------------------------------------------------------------------
def _build_unframe_kernel(K, P, NP, pad_left, read_off, windowed):
    # yk_ref : (K, Bt, N*P)   chunk-major frames; yk_ref[k] is (Bt, N*P)
    # wk_ref : (K, 1,  N*P)   window in the same layout (windowed path only)
    # inv_ref: (1, T_out_pad) 1 / fold(window), offset by `start`
    # o_ref  : (Bt, T_out_pad) reverted waveform (lane-dense, batch on sublanes)
    # acc_ref: (Bt, T_acc)    f32 flat-time accumulator scratch

    def chunk(yk_ref, wk_ref, k):
        zk = yk_ref[k].astype(jnp.float32)
        if windowed:
            zk = zk * wk_ref[k]
        return zk

    def body(yk_ref, wk_ref, inv_ref, o_ref, acc_ref):
        bt, t_acc = acc_ref.shape
        # Chunk 0: plain assign (skip the full-accumulator zero pass).
        acc_ref[:, pad_left:pad_left + NP] = chunk(yk_ref, wk_ref, 0)
        tail = pad_left + NP
        if tail < t_acc:
            acc_ref[:, tail:] = jnp.zeros((bt, t_acc - tail), jnp.float32)
        if K <= 8:
            for k in range(1, K):                      # small static unroll
                off = pad_left + k * P
                acc_ref[:, off:off + NP] += chunk(yk_ref, wk_ref, k)
        elif K > 1:
            # Large K (small hop): rolled loop keeps vreg pressure flat.
            g = math.gcd(P, pad_left)                  # gcd(P, 0) == P
            def loop_body(k, carry):
                off = pl.multiple_of(k * P + pad_left, g)
                acc_ref[:, pl.ds(off, NP)] += chunk(yk_ref, wk_ref, k)
                return carry
            lax.fori_loop(1, K, loop_body, 0, unroll=4)
        # Lane-aligned epilogue: aligned read, broadcast multiply, full-width store.
        t_pad = o_ref.shape[-1]
        o_ref[...] = (acc_ref[:, read_off:read_off + t_pad]
                      * inv_ref[...]).astype(o_ref.dtype)

    if windowed:
        def kernel(yk_ref, wk_ref, inv_ref, o_ref, acc_ref):
            body(yk_ref, wk_ref, inv_ref, o_ref, acc_ref)
    else:
        def kernel(yk_ref, inv_ref, o_ref, acc_ref):
            body(yk_ref, None, inv_ref, o_ref, acc_ref)
    return kernel


# ----------------------------------------------------------------------------
# Batch-tile selection from an explicit VMEM model
# ----------------------------------------------------------------------------
_VMEM_WORKSET_BUDGET = 24 << 20     # per-step working-set target (fits v5e/v6e/v7x)


def _choose_batch_tile(B, K, NP, T_acc, T_out_pad, in_bytes, out_bytes):
    np_pad = _round_up(NP, 128)     # lane padding of the framed-input tile
    per_row = (2 * K * np_pad * in_bytes      # double-buffered framed input
               + 4 * T_acc                    # f32 accumulator scratch
               + 2 * T_out_pad * out_bytes)   # double-buffered output
    bt = max(8, (_VMEM_WORKSET_BUDGET // per_row) // 8 * 8)
    bt = min(bt, 256, _round_up(B, 8))
    if B > 8:
        # Keep >= 2 parallel grid steps so both v7x TensorCores get work.
        bt = min(bt, _round_up(-(-B // 2), 8))
    return max(bt, 8), per_row


# ----------------------------------------------------------------------------
# Wrapper: shape handling, layout plumbing, pallas_call
# ----------------------------------------------------------------------------
def unframe(y, frame_length, frame_period, out_length=None,
            center=True, norm="none", window="rectangular"):
    assert 2 <= y.ndim <= 4, "Input must be 2D, 3D, or 4D tensor"
    N, L = int(y.shape[-2]), int(y.shape[-1])
    assert L == frame_length
    assert frame_length >= 1 and frame_period >= 1
    P = int(frame_period)

    lead = y.shape[:-2]
    B = int(np.prod(lead)) if lead else 1

    T_full = (N - 1) * P + L
    start = frame_length // 2 if center else 0
    max_out = T_full - start
    out_len = max_out if out_length is None else min(int(out_length), max_out)

    (wk, inv, K, Lp, NP, pad_left, read_off, T_out_pad, T_acc,
     windowed) = _unframe_plan(N, L, P, out_len, start, window, norm)

    in_bytes = jnp.dtype(y.dtype).itemsize
    Bt, per_row = _choose_batch_tile(B, K, NP, T_acc, T_out_pad, in_bytes, in_bytes)
    B_pad = _round_up(B, Bt)
    grid = (B_pad // Bt,)

    # Layout plumbing (XLA, outside the kernel): pad L -> K*P, regroup frames
    # into chunk-major layout (K, B_pad, N*P) so chunk k is a contiguous
    # (Bt, N*P) slab matching the accumulator's batch-on-sublane layout.
    y3 = y.reshape(B, N, L)
    if Lp > L:
        y3 = jnp.pad(y3, ((0, 0), (0, 0), (0, Lp - L)))
    yk = y3.reshape(B, N, K, P).transpose(2, 0, 1, 3).reshape(K, B, NP)
    if B_pad > B:
        yk = jnp.pad(yk, ((0, 0), (0, B_pad - B), (0, 0)))

    kernel = _build_unframe_kernel(K, P, NP, pad_left, read_off, windowed)

    in_specs = [pl.BlockSpec((K, Bt, NP), lambda b: (0, b, 0))]
    args = [yk]
    if windowed:
        in_specs.append(pl.BlockSpec((K, 1, NP), lambda b: (0, 0, 0)))
        args.append(wk)
    in_specs.append(pl.BlockSpec((1, T_out_pad), lambda b: (0, 0)))
    args.append(inv)

    # Explicit VMEM budget: footprint + headroom, kept below v7x's 64 MiB.
    np_pad = _round_up(NP, 128)
    shared = (2 * K * 8 * np_pad * 4 if windowed else 0) + 2 * 8 * T_out_pad * 4
    footprint = Bt * per_row + shared
    vmem_limit = int(min(60 << 20, max(2 * footprint + (4 << 20), 32 << 20)))

    out = pl.pallas_call(
        kernel,
        grid=grid,
        in_specs=in_specs,
        out_specs=pl.BlockSpec((Bt, T_out_pad), lambda b: (b, 0)),
        out_shape=jax.ShapeDtypeStruct((B_pad, T_out_pad), y.dtype),
        scratch_shapes=[pltpu.VMEM((Bt, T_acc), jnp.float32)],
        compiler_params=pltpu.CompilerParams(
            dimension_semantics=("parallel",),
            vmem_limit_bytes=vmem_limit),
    )(*args)

    out = out[:B, :out_len]
    if lead:
        return out.reshape(lead + (out_len,))
    return out.reshape(out_len)


# ----------------------------------------------------------------------------
# Pure-numpy reference (window-aware) for correctness check
# ----------------------------------------------------------------------------
def _unframe_ref(y, L, P, out_length=None, center=True, w=None):
    y = np.asarray(y, dtype=np.float64)
    N = y.shape[-2]
    if w is None:
        w = np.ones(L, dtype=np.float64)
    T_full = (N - 1) * P + L
    lead = y.shape[:-2]
    acc = np.zeros(lead + (T_full,), dtype=np.float64)
    wacc = np.zeros(T_full, dtype=np.float64)
    for n in range(N):
        acc[..., n * P:n * P + L] += y[..., n, :] * w
        wacc[n * P:n * P + L] += w
    s = L // 2 if center else 0
    e = T_full if out_length is None else min(s + out_length, T_full)
    return acc[..., s:e] / wacc[s:e]


if __name__ == "__main__":
    # --- 1) Docstring example: frame(ramp(1,9), L=5, P=2) then unframe ---
    y_doc = jnp.array(
        [[0., 0., 1., 2., 3.],
         [1., 2., 3., 4., 5.],
         [3., 4., 5., 6., 7.],
         [5., 6., 7., 8., 9.],
         [7., 8., 9., 0., 0.]], dtype=jnp.float32)
    x_doc = unframe(y_doc, frame_length=5, frame_period=2, out_length=9)
    jax.block_until_ready(x_doc)
    np.testing.assert_allclose(
        np.asarray(x_doc), np.arange(1, 10, dtype=np.float32), rtol=1e-5, atol=1e-5)

    key = jax.random.PRNGKey(0)
    k1, k2 = jax.random.split(key)

    # --- 2) Random batched 3-D input (B=2), rectangular fast path ---
    y = jax.random.normal(key, (2, 8, 16), dtype=jnp.float32)
    out = unframe(y, frame_length=16, frame_period=4, out_length=29)
    jax.block_until_ready(out)
    ref = _unframe_ref(np.asarray(y), L=16, P=4, out_length=29)
    np.testing.assert_allclose(np.asarray(out), ref, rtol=1e-5, atol=1e-5)

    # --- 3) 4-D input, hamming window, center=False (windowed path, B=4) ---
    y4 = jax.random.normal(k1, (2, 2, 6, 16), dtype=jnp.float32)
    out4 = unframe(y4, frame_length=16, frame_period=8,
                   center=False, window="hamming")
    jax.block_until_ready(out4)
    ref4 = _unframe_ref(np.asarray(y4), L=16, P=8, center=False, w=np.hamming(16))
    np.testing.assert_allclose(np.asarray(out4), ref4, rtol=1e-5, atol=1e-5)

    # --- 4) B=8, full default output length ---
    y8 = jax.random.normal(k2, (8, 8, 16), dtype=jnp.float32)
    out8 = unframe(y8, frame_length=16, frame_period=4)
    jax.block_until_ready(out8)
    ref8 = _unframe_ref(np.asarray(y8), L=16, P=4)
    np.testing.assert_allclose(np.asarray(out8), ref8, rtol=1e-5, atol=1e-5)

    print("KERNEL_OK")
</pallas_src>

<mosaic_0001>
module attributes {stable_mosaic.version = 11 : i64} {
  func.func @kernel(%arg0: i32, %arg1: memref<3x8x10xf32, #tpu.memory_space<vmem>>, %arg2: memref<1x128xf32, #tpu.memory_space<vmem>>, %arg3: memref<8x128xf32, #tpu.memory_space<vmem>>, %arg4: memref<8x256xf32, #tpu.memory_space<vmem>>) attributes {dimension_semantics = [#tpu.dimension_semantics<parallel>], iteration_bounds = array<i64: 1>, scalar_prefetch = 0 : i64, scratch_operands = 1 : i64, tpu.core_type = #tpu.core_type<tc>, window_params = [{transform_indices = @transform_0, window_bounds = array<i64: 3, 8, 10>}, {pipeline_mode = #tpu.pipeline_mode<synchronous>, transform_indices = @transform_1, window_bounds = array<i64: 1, 128>}, {transform_indices = @transform_2, window_bounds = array<i64: 8, 128>}]} {
    %c0 = arith.constant 0 : index
    %c0_0 = arith.constant 0 : index
    %c0_1 = arith.constant 0 : index
    %0 = vector.load %arg1[%c0, %c0_0, %c0_1] : memref<3x8x10xf32, #tpu.memory_space<vmem>>, vector<1x8x10xf32>
    %1 = vector.shape_cast %0 : vector<1x8x10xf32> to vector<8x10xf32>
    %c0_2 = arith.constant 0 : index
    %c126 = arith.constant 126 : index
    %2 = vector.load %arg4[%c0_2, %c126] : memref<8x256xf32, #tpu.memory_space<vmem>>, vector<8x10xf32>
    tpu.vector_store %arg4[%c0_2, %c126], %1 {strides = array<i32>} : memref<8x256xf32, #tpu.memory_space<vmem>>, vector<8x10xf32>,
    %cst = arith.constant 0.000000e+00 : f32
    %3 = vector.broadcast %cst : f32 to vector<8x120xf32>
    %c0_3 = arith.constant 0 : index
    %c136 = arith.constant 136 : index
    %4 = vector.load %arg4[%c0_3, %c136] : memref<8x256xf32, #tpu.memory_space<vmem>>, vector<8x120xf32>
    tpu.vector_store %arg4[%c0_3, %c136], %3 {strides = array<i32>} : memref<8x256xf32, #tpu.memory_space<vmem>>, vector<8x120xf32>,
    %c0_4 = arith.constant 0 : index
    %c128 = arith.constant 128 : index
    %5 = vector.load %arg4[%c0_4, %c128] : memref<8x256xf32, #tpu.memory_space<vmem>>, vector<8x10xf32>
    %c1 = arith.constant 1 : index
    %c0_5 = arith.constant 0 : index
    %c0_6 = arith.constant 0 : index
    %6 = vector.load %arg1[%c1, %c0_5, %c0_6] : memref<3x8x10xf32, #tpu.memory_space<vmem>>, vector<1x8x10xf32>
    %7 = vector.shape_cast %6 : vector<1x8x10xf32> to vector<8x10xf32>
    %8 = arith.addf %5, %7 : vector<8x10xf32>
    %c0_7 = arith.constant 0 : index
    %c128_8 = arith.constant 128 : index
    %9 = vector.load %arg4[%c0_7, %c128_8] : memref<8x256xf32, #tpu.memory_space<vmem>>, vector<8x10xf32>
    tpu.vector_store %arg4[%c0_7, %c128_8], %8 {strides = array<i32>} : memref<8x256xf32, #tpu.memory_space<vmem>>, vector<8x10xf32>,
    %c0_9 = arith.constant 0 : index
    %c130 = arith.constant 130 : index
    %10 = vector.load %arg4[%c0_9, %c130] : memref<8x256xf32, #tpu.memory_space<vmem>>, vector<8x10xf32>
    %c2 = arith.constant 2 : index
    %c0_10 = arith.constant 0 : index
    %c0_11 = arith.constant 0 : index
    %11 = vector.load %arg1[%c2, %c0_10, %c0_11] : memref<3x8x10xf32, #tpu.memory_space<vmem>>, vector<1x8x10xf32>
    %12 = vector.shape_cast %11 : vector<1x8x10xf32> to vector<8x10xf32>
    %13 = arith.addf %10, %12 : vector<8x10xf32>
    %c0_12 = arith.constant 0 : index
    %c130_13 = arith.constant 130 : index
    %14 = vector.load %arg4[%c0_12, %c130_13] : memref<8x256xf32, #tpu.memory_space<vmem>>, vector<8x10xf32>
    tpu.vector_store %arg4[%c0_12, %c130_13], %13 {strides = array<i32>} : memref<8x256xf32, #tpu.memory_space<vmem>>, vector<8x10xf32>,
    %c0_14 = arith.constant 0 : index
    %c128_15 = arith.constant 128 : index
    %15 = vector.load %arg4[%c0_14, %c128_15] : memref<8x256xf32, #tpu.memory_space<vmem>>, vector<8x128xf32>
    %c0_16 = arith.constant 0 : index
    %c0_17 = arith.constant 0 : index
    %16 = vector.load %arg2[%c0_16, %c0_17] : memref<1x128xf32, #tpu.memory_space<vmem>>, vector<1x128xf32>
    %17 = vector.broadcast %16 : vector<1x128xf32> to vector<8x128xf32>
    %18 = arith.mulf %15, %17 : vector<8x128xf32>
    %c0_18 = arith.constant 0 : index
    %c0_19 = arith.constant 0 : index
    %19 = vector.load %arg3[%c0_18, %c0_19] : memref<8x128xf32, #tpu.memory_space<vmem>>, vector<8x128xf32>
    tpu.vector_store %arg3[%c0_18, %c0_19], %18 {strides = array<i32>} : memref<8x128xf32, #tpu.memory_space<vmem>>, vector<8x128xf32>,
    return
  }
  func.func @transform_0(%arg0: i32) -> (i32, i32, i32) {
    %c0_i32 = arith.constant 0 : i32
    %c0_i32_0 = arith.constant 0 : i32
    %c0_i32_1 = arith.constant 0 : i32
    return %c0_i32, %arg0, %c0_i32_0 : i32, i32, i32
  }
  func.func @transform_1(%arg0: i32) -> (i32, i32) {
    %c0_i32 = arith.constant 0 : i32
    %c0_i32_0 = arith.constant 0 : i32
    %c0_i32_1 = arith.constant 0 : i32
    return %c0_i32, %c0_i32_0 : i32, i32
  }
  func.func @transform_2(%arg0: i32) -> (i32, i32) {
    %c0_i32 = arith.constant 0 : i32
    %c0_i32_0 = arith.constant 0 : i32
    return %arg0, %c0_i32 : i32, i32
  }
}

</mosaic_0001>

<llo_original>
// kernel: tpu_custom_call.1
$region0: #{tpu_custom_call.1}
  #allocation0 [shape = 'u32[]', space=smem, size = 0x4, offset = 0x4, fixed_abs, tag = 'smem constant byte address 0x4 - core index']
  #allocation1 [shape = 'u32[72,128]{1,0:T(1,128)}', space=vmem, size = 0x9000, scoped, tag = 'internal scratch']
  #allocation2 [shape = 'f32[8,256]{1,0:T(8,128)}', space=vmem, size = 0x2000, scoped, tag = 'scratch operand']
  %s0 = inlined_call_operand.hbm [shape: f32[3,8,10], index: 0, kind: input, shape index: {}]
  %s1 = inlined_call_operand.hbm [shape: f32[1,128], index: 1, kind: input, shape index: {}]
  %s2 = inlined_call_operand.hbm [shape: f32[8,128], index: 2, kind: output, shape index: {}]
  %s3 = sld [smem:[#allocation0]]
  $region26: #{tpu_custom_call.1} parent=0
    _
  %s5 = ssub.s32 1, %s3
  %s6 = scalar_select 0, %s5, %s3
  $region1: #{tpu_custom_call.1} parent=0
    #allocation3 [shape = 'u8[12288]{0}', space=vmem, size = 0x3000, scoped, tag = 'input window, operand 0, single buffered']
    #allocation4 [shape = 's32[1]{0}', space=sflag, size = 0x4, scoped, tag = 'scoped memory for tpu_custom_call.1']
    #allocation5 [shape = 's32[1]{0}', space=sflag, size = 0x4, scoped, tag = 'scoped memory for tpu_custom_call.1']
    #allocation6 [shape = 'u8[512]{0}', space=vmem, size = 0x400, scoped, tag = 'input window, operand 1, single buffered']
    #allocation7 [shape = 's32[1]{0}', space=sflag, size = 0x4, scoped, tag = 'scoped memory for tpu_custom_call.1']
    #allocation8 [shape = 'u8[4096]{0}', space=vmem, size = 0x1000, scoped, tag = 'output window, operand 0, single buffered']
    %7 = vsyncpa [#allocation4], 0
    %8 = vsyncpa [#allocation7], 0
    %9 = vsyncpa [#allocation5], 0
    // Predicated region
    $region2: #{tpu_custom_call.1} parent=1 // pred_check
      _
    $region3: #{tpu_custom_call.1} parent=1 // pred_check_branch
      %11 = sbr.rel (0) target = $region5
    $region4: #{tpu_custom_call.1} parent=1 // pred_region
      %13 = vsyncadd [#allocation4], 0
      %s14 = sshll.u32 %s0, 4
      %s15 = int_to_ptr.hbm [resolvable:$true] %s14
      %s16 = sshll.u32 [#allocation3], 4
      %s17 = int_to_ptr.vmem [resolvable:$true] %s16
      %22 = dma.hbm_to_vmem [thread:$0]  %s15, 384, %s17, [#allocation4], 128, 128, 8
    $region5: #{tpu_custom_call.1} parent=1 // pred_fallthru
      _
    // Predicated region
    $region6: #{tpu_custom_call.1} parent=1 // pred_check
      _
    $region7: #{tpu_custom_call.1} parent=1 // pred_check_branch
      %24 = sbr.rel (0) target = $region9
    $region8: #{tpu_custom_call.1} parent=1 // pred_region
      %26 = vsyncadd [#allocation7], 0
      %s28 = sshll.u32 %s1, 4
      %s29 = int_to_ptr.hbm [resolvable:$true] %s28
      %s30 = sshll.u32 [#allocation6], 4
      %s31 = int_to_ptr.vmem [resolvable:$true] %s30
      %33 = dma.hbm_to_vmem [thread:$0]  %s29, 16, %s31, [#allocation7]
    $region9: #{tpu_custom_call.1} parent=1 // pred_fallthru
      _
    // Predicated region
    $region10: #{tpu_custom_call.1} parent=1 // pred_check
      _
    $region11: #{tpu_custom_call.1} parent=1 // pred_check_branch
      %35 = sbr.rel (0) target = $region13
    $region12: #{tpu_custom_call.1} parent=1 // pred_region
      %37 = dma.done [#allocation4], 384
    $region13: #{tpu_custom_call.1} parent=1 // pred_fallthru
      _
    // Predicated region
    $region14: #{tpu_custom_call.1} parent=1 // pred_check
      _
    $region15: #{tpu_custom_call.1} parent=1 // pred_check_branch
      %39 = sbr.rel (0) target = $region17
    $region16: #{tpu_custom_call.1} parent=1 // pred_region
      %41 = dma.done [#allocation7], 16
    $region17: #{tpu_custom_call.1} parent=1 // pred_fallthru
      _
    %v42 = vld [vmem:[#allocation3] sm:$0xff]
    %44 = vrot.lane.b32.xlu0 %v42, 126
    %v45 = vpop.permute.xlu0 %44
    %vm47 = vcmask 1048560
    %48 = vst.msk [vmem:[#allocation2] sm:$0xff] %vm47, %v45
    %vm49 = vcmask 64512
    %50 = vst.msk [vmem:[#allocation2 + $0x8] sm:$0xff] %vm49, %v45
    %vm51 = vcmask 1047616
    %52 = vst.msk [vmem:[#allocation2 + $0x8] sm:$0xff] %vm51, 0.0
    %v53 = vld [vmem:[#allocation2 + $0x8] sm:$0xff]
    %s54 = scalar_lea.vmem [#allocation3], 8
    %v55 = vld [vmem:[%s54] sm:$0xff]
    %v56 = vadd.f32 %v53, %v55
    %vm57 = vcmask 80896
    %58 = vst.msk [vmem:[#allocation2 + $0x8] sm:$0xff] %vm57, %v56
    %v59 = vld [vmem:[#allocation2 + $0x8] sm:$0xff]
    %s60 = scalar_lea.vmem [#allocation3], 16
    %v61 = vld [vmem:[%s60] sm:$0xff]
    %63 = vrot.lane.b32.xlu0 %v61, 2
    %v64 = vpop.permute.xlu0 %63
    %v66 = vadd.f32 %v59, %v64
    %vm67 = vcmask 97296
    %68 = vst.msk [vmem:[#allocation2 + $0x8] sm:$0xff] %vm67, %v66
    %v69 = vld [vmem:[#allocation2 + $0x8] sm:$0xff]
    %v70 = vld [vmem:[#allocation6] sm:$0x1]
    %v72 = vperm.slane %v70, 0
    %v74 = vmul.f32 %v69, %v72
    %75 = vst [vmem:[#allocation8] sm:$0xff] %v74
    // Predicated region
    $region18: #{tpu_custom_call.1} parent=1 // pred_check
      _
    $region19: #{tpu_custom_call.1} parent=1 // pred_check_branch
      %77 = sbr.rel (0) target = $region21
    $region20: #{tpu_custom_call.1} parent=1 // pred_region
      %79 = vsyncadd [#allocation5], 0
      %s81 = sshll.u32 [#allocation8], 4
      %s82 = int_to_ptr.vmem [resolvable:$true] %s81
      %s83 = sshll.u32 %s2, 4
      %s84 = int_to_ptr.hbm [resolvable:$true] %s83
      %86 = dma.vmem_to_hbm [thread:$0]  %s82, 128, %s84, [#allocation5]
    $region21: #{tpu_custom_call.1} parent=1 // pred_fallthru
      _
    // Predicated region
    $region22: #{tpu_custom_call.1} parent=1 // pred_check
      _
    $region23: #{tpu_custom_call.1} parent=1 // pred_check_branch
      %88 = sbr.rel (0) target = $region25
    $region24: #{tpu_custom_call.1} parent=1 // pred_region
      %90 = dma.done [#allocation5], 128
    $region25: #{tpu_custom_call.1} parent=1 // pred_fallthru
      _
    %91 = vsyncpa [#allocation4], 1
    %92 = vsyncpa [#allocation7], 1
    %93 = vsyncpa [#allocation5], 1

</llo_original>
